<compile_context>
chip_gen: v7x
topology: tpu7x:2x2x1
jax: 0.10.0
libtpu: 0.0.40
codegen_flags: <defaults>
</compile_context>

<pallas_src>
import functools

import jax
import jax.numpy as jnp
from jax.experimental import pallas as pl
from jax.experimental.pallas import tpu as pltpu


def _cdiv(a, b):
    return (a + b - 1) // b


def _round_up(v, m):
    return _cdiv(v, m) * m


# ---------------------------------------------------------------------------
# Kernel: grid = (batch_tiles, k_tiles); K (feature chunks) is the reduction.
# ---------------------------------------------------------------------------
def _mlp_kernel(x_ref, w1_ref, tail_ref, o_ref, h_acc,
                *, hidden, o_pad, r_b1, r_w2, r_b2):
    k = pl.program_id(1)

    @pl.when(k == 0)
    def _init():
        h_acc[...] = jnp.zeros_like(h_acc)

    # fc1 partial product on the MXU: (bb, tk)bf16 @ (tk, H)bf16 -> f32 acc.
    h_acc[...] += jnp.dot(x_ref[...], w1_ref[...],
                          preferred_element_type=jnp.float32)

    @pl.when(k == pl.num_programs(1) - 1)
    def _finalize():
        b1 = tail_ref[r_b1:r_b1 + 1, 0:hidden]                # (1, H)    f32
        h = jnp.maximum(h_acc[...] + b1, 0.0)                 # ReLU      f32
        # fc3 as one more (tiny) MXU matmul into a lane-dense output tile.
        w2 = tail_ref[r_w2:r_w2 + hidden, 0:o_pad]            # (H, O_pad) f32
        b2 = tail_ref[r_b2:r_b2 + 1, 0:o_pad]                 # (1, O_pad) f32
        out = jnp.dot(h, w2, preferred_element_type=jnp.float32) + b2
        o_ref[...] = out.astype(o_ref.dtype)


# ---------------------------------------------------------------------------
# Wrapper
# ---------------------------------------------------------------------------
def network_forward(x, w1, b1, w2, b2, *, bb_cap=512, target_steps=8,
                    x_budget_bytes=20 << 20):
    """Forward pass of `Network` (fc1 -> ReLU -> fc3).

    x:  (B, input_size)        w1: (input_size, hidden)   b1: (hidden,)
    w2: (hidden, output)       b2: (output,)
    Weights are (in_features, out_features), i.e. torch weights transposed.

    NOTE: in production the bf16 cast / zero-padding / tail packing of the
    parameters would be done once at model-load time; it is inlined here so
    the script stays self-contained.
    """
    B, input_size = x.shape
    hidden = w1.shape[1]
    output = w2.shape[1]
    assert w1.shape == (input_size, hidden)
    assert w2.shape == (hidden, output)

    # ---- tiling -----------------------------------------------------------
    in_pad = _round_up(input_size, 128)            # lane-aligned feature dim
    if B <= 8:
        bb = B                                     # full (tiny) batch per tile
    else:
        bb = max(8, min(bb_cap,
                        _round_up(_cdiv(B, target_steps), 8),
                        _round_up(B, 8)))
    # K tile: double-buffered bf16 x tile (2 * bb * tk * 2B) must fit budget.
    max_tk = max(128, (x_budget_bytes // (4 * bb)) // 128 * 128)
    n_k = _cdiv(in_pad, max_tk)
    tk = _round_up(_cdiv(in_pad, n_k), 128)
    in_pad = tk * n_k                              # exact multiple of tk
    n_b = _cdiv(B, bb)
    o_pad = _round_up(output, 128)                 # lane-dense output
    cols = max(o_pad, _round_up(hidden, 128))

    # ---- pack / pad operands (bf16 streaming, f32 tail) -------------------
    x_p = jnp.zeros((B, in_pad), jnp.bfloat16).at[:, :input_size].set(
        x.astype(jnp.bfloat16))
    w1_p = jnp.zeros((in_pad, hidden), jnp.bfloat16).at[:input_size, :].set(
        w1.astype(jnp.bfloat16))
    # Small resident f32 tail slab: b1 | w2 | b2 (8-row aligned, lane-dense).
    r_b1, r_w2 = 0, 8
    r_b2 = r_w2 + _round_up(hidden, 8)
    rows = r_b2 + 8
    tail = jnp.zeros((rows, cols), jnp.float32)
    tail = tail.at[r_b1, :hidden].set(b1.astype(jnp.float32).reshape(hidden))
    tail = tail.at[r_w2:r_w2 + hidden, :output].set(w2.astype(jnp.float32))
    tail = tail.at[r_b2, :output].set(b2.astype(jnp.float32).reshape(output))

    # ---- VMEM accounting & compiler params --------------------------------
    lane = 128
    needed = (2 * bb * tk * 2                      # x double buffer (bf16)
              + 2 * tk * max(hidden, lane) * 2     # w1 double buffer (lane pad)
              + 2 * bb * o_pad * 4                 # output double buffer (f32)
              + rows * cols * 4                    # resident tail slab
              + bb * max(hidden, lane) * 4)        # h accumulator scratch
    vmem_limit = int(min(56 << 20, max(needed + needed // 4 + (1 << 20),
                                       32 << 20)))

    flops = 2 * B * in_pad * hidden + 2 * B * hidden * o_pad
    bytes_accessed = (x_p.size * 2 + n_b * w1_p.size * 2
                      + B * o_pad * 4 + tail.size * 4)

    kernel = functools.partial(_mlp_kernel, hidden=hidden, o_pad=o_pad,
                               r_b1=r_b1, r_w2=r_w2, r_b2=r_b2)

    out_padded = pl.pallas_call(
        kernel,
        out_shape=jax.ShapeDtypeStruct((B, o_pad), jnp.float32),
        grid=(n_b, n_k),
        in_specs=[
            pl.BlockSpec((bb, tk), lambda i, k: (i, k)),       # x tile (streamed)
            pl.BlockSpec((tk, hidden), lambda i, k: (k, 0)),   # w1 K-chunk
            pl.BlockSpec((rows, cols), lambda i, k: (0, 0)),   # resident tail
        ],
        out_specs=pl.BlockSpec((bb, o_pad), lambda i, k: (i, 0)),
        scratch_shapes=[pltpu.VMEM((bb, hidden), jnp.float32)],
        compiler_params=pltpu.CompilerParams(
            dimension_semantics=("parallel", "arbitrary"),
            vmem_limit_bytes=vmem_limit),
        cost_estimate=pl.CostEstimate(flops=flops, transcendentals=0,
                                      bytes_accessed=bytes_accessed),
    )(x_p, w1_p, tail)

    return out_padded[:, :output]


if __name__ == "__main__":
    # Small, module-consistent shapes (TF-IDF features as a dense matrix).
    batch = 8
    input_size = 32      # stand-in for the TF-IDF vocabulary size
    hidden_size = 4      # matches the module's `hidden_size = 4`
    output_size = 2      # matches the module's `output_size = 2`

    key = jax.random.PRNGKey(0)
    kx, k1, k2, k3, k4 = jax.random.split(key, 5)
    x = jax.random.uniform(kx, (batch, input_size), jnp.float32)

    # torch.nn.Linear-style U(-1/sqrt(fan_in), 1/sqrt(fan_in)) init; weights
    # stored as (in_features, out_features) == torch weight transposed.
    bound1 = 1.0 / (input_size ** 0.5)
    bound2 = 1.0 / (hidden_size ** 0.5)
    w1 = jax.random.uniform(k1, (input_size, hidden_size), jnp.float32,
                            -bound1, bound1)
    b1 = jax.random.uniform(k2, (hidden_size,), jnp.float32, -bound1, bound1)
    w2 = jax.random.uniform(k3, (hidden_size, output_size), jnp.float32,
                            -bound2, bound2)
    b2 = jax.random.uniform(k4, (output_size,), jnp.float32, -bound2, bound2)

    out = network_forward(x, w1, b1, w2, b2)
    out = jax.block_until_ready(out)

    # Reference mirroring the kernel's numerics (bf16 x/w1, f32 accumulation).
    x_bf = x.astype(jnp.bfloat16).astype(jnp.float32)
    w1_bf = w1.astype(jnp.bfloat16).astype(jnp.float32)
    h_ref = jnp.maximum(
        jnp.dot(x_bf, w1_bf, precision=jax.lax.Precision.HIGHEST) + b1, 0.0)
    ref = jnp.dot(h_ref, w2, precision=jax.lax.Precision.HIGHEST) + b2

    assert out.shape == (batch, output_size)
    max_err = float(jnp.max(jnp.abs(out - ref)))
    assert jnp.allclose(out, ref, atol=1e-3, rtol=1e-3), max_err

    print("KERNEL_OK")
</pallas_src>

<mosaic_0001>
module attributes {stable_mosaic.version = 11 : i64} {
  func.func @_mlp_kernel(%arg0: i32, %arg1: i32, %arg2: memref<8x128xbf16, #tpu.memory_space<vmem>>, %arg3: memref<128x4xbf16, #tpu.memory_space<vmem>>, %arg4: memref<24x128xf32, #tpu.memory_space<vmem>>, %arg5: memref<8x128xf32, #tpu.memory_space<vmem>>, %arg6: memref<8x4xf32, #tpu.memory_space<vmem>>) attributes {dimension_semantics = [#tpu.dimension_semantics<parallel>, #tpu.dimension_semantics<arbitrary>], iteration_bounds = array<i64: 1, 1>, scalar_prefetch = 0 : i64, scratch_operands = 1 : i64, tpu.core_type = #tpu.core_type<tc>, window_params = [{transform_indices = @transform_0, window_bounds = array<i64: 8, 128>}, {transform_indices = @transform_1, window_bounds = array<i64: 128, 4>}, {pipeline_mode = #tpu.pipeline_mode<synchronous>, transform_indices = @transform_2, window_bounds = array<i64: 24, 128>}, {transform_indices = @transform_3, window_bounds = array<i64: 8, 128>}]} {
    %c0_i32 = arith.constant 0 : i32
    %0 = arith.cmpi eq, %arg1, %c0_i32 : i32
    %1 = arith.extui %0 : i1 to i32
    %c0_i32_0 = arith.constant 0 : i32
    %2 = arith.cmpi ne, %1, %c0_i32_0 : i32
    scf.if %2 {
      %cst_10 = arith.constant 0.000000e+00 : f32
      %12 = vector.broadcast %cst_10 : f32 to vector<8x4xf32>
      %c0_11 = arith.constant 0 : index
      %c0_12 = arith.constant 0 : index
      %13 = vector.load %arg6[%c0_11, %c0_12] : memref<8x4xf32, #tpu.memory_space<vmem>>, vector<8x4xf32>
      tpu.vector_store %arg6[%c0_11, %c0_12], %12 {strides = array<i32>} : memref<8x4xf32, #tpu.memory_space<vmem>>, vector<8x4xf32>,
    } else {
    }
    %c0 = arith.constant 0 : index
    %c0_1 = arith.constant 0 : index
    %3 = vector.load %arg6[%c0, %c0_1] : memref<8x4xf32, #tpu.memory_space<vmem>>, vector<8x4xf32>
    %c0_2 = arith.constant 0 : index
    %c0_3 = arith.constant 0 : index
    %4 = vector.load %arg2[%c0_2, %c0_3] : memref<8x128xbf16, #tpu.memory_space<vmem>>, vector<8x128xbf16>
    %c0_4 = arith.constant 0 : index
    %c0_5 = arith.constant 0 : index
    %5 = vector.load %arg3[%c0_4, %c0_5] : memref<128x4xbf16, #tpu.memory_space<vmem>>, vector<128x4xbf16>
    %cst = arith.constant dense<0.000000e+00> : vector<8x4xf32>
    %6 = tpu.matmul %4, %5, %cst {dimension_numbers = #tpu.dot_dimension_numbers<[1], [0], [0], [1], [0, 0, 1, 1], [], []>} : vector<8x128xbf16>, vector<128x4xbf16>, vector<8x4xf32> -> vector<8x4xf32>
    %7 = arith.addf %3, %6 : vector<8x4xf32>
    %c0_6 = arith.constant 0 : index
    %c0_7 = arith.constant 0 : index
    %8 = vector.load %arg6[%c0_6, %c0_7] : memref<8x4xf32, #tpu.memory_space<vmem>>, vector<8x4xf32>
    tpu.vector_store %arg6[%c0_6, %c0_7], %7 {strides = array<i32>} : memref<8x4xf32, #tpu.memory_space<vmem>>, vector<8x4xf32>,
    %c0_i32_8 = arith.constant 0 : i32
    %9 = arith.cmpi eq, %arg1, %c0_i32_8 : i32
    %10 = arith.extui %9 : i1 to i32
    %c0_i32_9 = arith.constant 0 : i32
    %11 = arith.cmpi ne, %10, %c0_i32_9 : i32
    scf.if %11 {
      %c0_10 = arith.constant 0 : index
      %c0_11 = arith.constant 0 : index
      %12 = vector.load %arg4[%c0_10, %c0_11] : memref<24x128xf32, #tpu.memory_space<vmem>>, vector<1x4xf32>
      %c0_12 = arith.constant 0 : index
      %c0_13 = arith.constant 0 : index
      %13 = vector.load %arg6[%c0_12, %c0_13] : memref<8x4xf32, #tpu.memory_space<vmem>>, vector<8x4xf32>
      %14 = vector.broadcast %12 : vector<1x4xf32> to vector<8x4xf32>
      %15 = arith.addf %13, %14 : vector<8x4xf32>
      %cst_14 = arith.constant 0.000000e+00 : f32
      %16 = vector.broadcast %cst_14 : f32 to vector<8x4xf32>
      %17 = arith.maximumf %15, %16 : vector<8x4xf32>
      %c8 = arith.constant 8 : index
      %c0_15 = arith.constant 0 : index
      %18 = vector.load %arg4[%c8, %c0_15] : memref<24x128xf32, #tpu.memory_space<vmem>>, vector<4x128xf32>
      %c16 = arith.constant 16 : index
      %c0_16 = arith.constant 0 : index
      %19 = vector.load %arg4[%c16, %c0_16] : memref<24x128xf32, #tpu.memory_space<vmem>>, vector<1x128xf32>
      %cst_17 = arith.constant dense<0.000000e+00> : vector<8x128xf32>
      %20 = tpu.matmul %17, %18, %cst_17 {dimension_numbers = #tpu.dot_dimension_numbers<[1], [0], [0], [1], [0, 0, 1, 1], [], []>} : vector<8x4xf32>, vector<4x128xf32>, vector<8x128xf32> -> vector<8x128xf32>
      %21 = vector.broadcast %19 : vector<1x128xf32> to vector<8x128xf32>
      %22 = arith.addf %20, %21 : vector<8x128xf32>
      %c0_18 = arith.constant 0 : index
      %c0_19 = arith.constant 0 : index
      %23 = vector.load %arg5[%c0_18, %c0_19] : memref<8x128xf32, #tpu.memory_space<vmem>>, vector<8x128xf32>
      tpu.vector_store %arg5[%c0_18, %c0_19], %22 {strides = array<i32>} : memref<8x128xf32, #tpu.memory_space<vmem>>, vector<8x128xf32>,
    } else {
    }
    return
  }
  func.func @transform_0(%arg0: i32, %arg1: i32) -> (i32, i32) {
    %c0_i32 = arith.constant 0 : i32
    return %arg0, %arg1 : i32, i32
  }
  func.func @transform_1(%arg0: i32, %arg1: i32) -> (i32, i32) {
    %c0_i32 = arith.constant 0 : i32
    %c0_i32_0 = arith.constant 0 : i32
    return %arg1, %c0_i32 : i32, i32
  }
  func.func @transform_2(%arg0: i32, %arg1: i32) -> (i32, i32) {
    %c0_i32 = arith.constant 0 : i32
    %c0_i32_0 = arith.constant 0 : i32
    %c0_i32_1 = arith.constant 0 : i32
    return %c0_i32, %c0_i32_0 : i32, i32
  }
  func.func @transform_3(%arg0: i32, %arg1: i32) -> (i32, i32) {
    %c0_i32 = arith.constant 0 : i32
    %c0_i32_0 = arith.constant 0 : i32
    return %arg0, %c0_i32 : i32, i32
  }
}

</mosaic_0001>

<llo_original>
// kernel: tpu_custom_call.1
$region0: #{tpu_custom_call.1}
  #allocation0 [shape = 'u32[]', space=smem, size = 0x4, offset = 0x4, fixed_abs, tag = 'smem constant byte address 0x4 - core index']
  #allocation1 [shape = 'u32[144,128]{1,0:T(1,128)}', space=vmem, size = 0x12000, scoped, tag = 'internal scratch']
  #allocation2 [shape = 'f32[8,4]{1,0:T(8,128)}', space=vmem, size = 0x1000, scoped, tag = 'scratch operand']
  %s0 = inlined_call_operand.vmem [shape: bf16[8,128], index: 0, kind: input, shape index: {}]
  %s1 = inlined_call_operand.vmem [shape: bf16[128,4], index: 1, kind: input, shape index: {}]
  %s2 = inlined_call_operand.vmem [shape: f32[24,128], index: 2, kind: input, shape index: {}]
  %s3 = inlined_call_operand.hbm [shape: f32[8,128], index: 3, kind: output, shape index: {}]
  %s4 = sld [smem:[#allocation0]]
  $region30: #{tpu_custom_call.1} parent=0
    _
  %s6 = ssub.s32 1, %s4
  %s7 = scalar_select 0, %s6, %s4
  $region1: #{tpu_custom_call.1} parent=0
    #allocation3 [shape = 'u8[4096]{0}', space=vmem, size = 0x1000, scoped, tag = 'output window, operand 0, single buffered']
    #allocation4 [shape = 's32[1]{0}', space=sflag, size = 0x4, scoped, tag = 'scoped memory for tpu_custom_call.1']
    %8 = vsyncpa [#allocation4], 0
    // Predicated region
    $region2: #{tpu_custom_call.1} parent=1 // pred_check
      _
    $region3: #{tpu_custom_call.1} parent=1 // pred_check_branch
      %10 = sbr.rel (0) target = $region5
    $region4: #{tpu_custom_call.1} parent=1 // pred_region
      _
    $region5: #{tpu_custom_call.1} parent=1 // pred_fallthru
      _
    // Predicated region
    $region6: #{tpu_custom_call.1} parent=1 // pred_check
      _
    $region7: #{tpu_custom_call.1} parent=1 // pred_check_branch
      %12 = sbr.rel (0) target = $region9
    $region8: #{tpu_custom_call.1} parent=1 // pred_region
      _
    $region9: #{tpu_custom_call.1} parent=1 // pred_fallthru
      _
    // Predicated region
    $region10: #{tpu_custom_call.1} parent=1 // pred_check
      _
    $region11: #{tpu_custom_call.1} parent=1 // pred_check_branch
      %14 = sbr.rel (0) target = $region13
    $region12: #{tpu_custom_call.1} parent=1 // pred_region
      _
    $region13: #{tpu_custom_call.1} parent=1 // pred_fallthru
      _
    %p16 = scmp.eq.s32.totalorder 0, 0
    // Predicated region
    $region14: #{tpu_custom_call.1} parent=1 // pred_check
      %p17 = pneg %p16
    $region15: #{tpu_custom_call.1} parent=1 // pred_check_branch
      %19 = sbr.rel (%p17) target = $region17
    $region16: #{tpu_custom_call.1} parent=1 // pred_region
      %vm20 = vcmask 31744
      %21 = vst.msk [vmem:[#allocation2] sm:$0xff] %vm20, 0.0
    $region17: #{tpu_custom_call.1} parent=1 // pred_fallthru
      _
    %v22 = vld [vmem:[#allocation2] sm:$0xff]
    %v23 = vld [vmem:[%s0] sm:$0xf]
    %v24 = vld [vmem:[%s1] sm:$0xf]
    %v25 = vld [vmem:[%s1 + $0x4] sm:$0xf]
    %v26 = vld [vmem:[%s1 + $0x8] sm:$0xf]
    %v27 = vld [vmem:[%s1 + $0xc] sm:$0xf]
    %v28 = vld [vmem:[%s1 + $0x10] sm:$0xf]
    %v29 = vld [vmem:[%s1 + $0x14] sm:$0xf]
    %v30 = vld [vmem:[%s1 + $0x18] sm:$0xf]
    %v31 = vld [vmem:[%s1 + $0x1c] sm:$0xf]
    %v32 = vld [vmem:[%s1 + $0x20] sm:$0xf]
    %v33 = vld [vmem:[%s1 + $0x24] sm:$0xf]
    %v34 = vld [vmem:[%s1 + $0x28] sm:$0xf]
    %v35 = vld [vmem:[%s1 + $0x2c] sm:$0xf]
    %v36 = vld [vmem:[%s1 + $0x30] sm:$0xf]
    %v37 = vld [vmem:[%s1 + $0x34] sm:$0xf]
    %v38 = vld [vmem:[%s1 + $0x38] sm:$0xf]
    %v39 = vld [vmem:[%s1 + $0x3c] sm:$0xf]
    %v56 = vunpack.c.l.b16 %v24
    %v57 = vunpack.c.l.b16 %v25
    %v58 = vunpack.c.l.b16 %v26
    %v59 = vunpack.c.l.b16 %v27
    %v60 = vunpack.c.l.b16 %v28
    %v61 = vunpack.c.l.b16 %v29
    %v62 = vunpack.c.l.b16 %v30
    %v63 = vunpack.c.l.b16 %v31
    %v64 = vunpack.c.l.b16 %v32
    %v65 = vunpack.c.l.b16 %v33
    %v66 = vunpack.c.l.b16 %v34
    %v67 = vunpack.c.l.b16 %v35
    %v68 = vunpack.c.l.b16 %v36
    %v69 = vunpack.c.l.b16 %v37
    %v70 = vunpack.c.l.b16 %v38
    %v71 = vunpack.c.l.b16 %v39
    %v72 = vpack.c.b16 %v57, %v56
    %v73 = vpack.c.b16 %v59, %v58
    %v74 = vpack.c.b16 %v61, %v60
    %v75 = vpack.c.b16 %v63, %v62
    %v76 = vpack.c.b16 %v65, %v64
    %v77 = vpack.c.b16 %v67, %v66
    %v78 = vpack.c.b16 %v69, %v68
    %v79 = vpack.c.b16 %v71, %v70
    %88 = vmatprep.subr.bf16.mxu0 0
    %89 = vmatpush1.bf16.msra.mxu0 %v72
    %90 = vmatprep.subr.bf16.mxu0 0
    %91 = vmatpush1.bf16.msra.mxu0 %v73
    %92 = vmatprep.subr.bf16.mxu0 0
    %93 = vmatpush1.bf16.msra.mxu0 %v74
    %94 = vmatprep.subr.bf16.mxu0 0
    %95 = vmatpush1.bf16.msra.mxu0 %v75
    %96 = vmatprep.subr.bf16.mxu0 0
    %97 = vmatpush1.bf16.msra.mxu0 %v76
    %98 = vmatprep.subr.bf16.mxu0 0
    %99 = vmatpush1.bf16.msra.mxu0 %v77
    %100 = vmatprep.subr.bf16.mxu0 0
    %101 = vmatpush1.bf16.msra.mxu0 %v78
    %102 = vmatprep.subr.bf16.mxu0 0
    %103 = vmatpush1.bf16.msra.mxu0 %v79
    %104 = vmatprep.subr.bf16.mxu0 0
    %105 = vmatpush1.bf16.msra.mxu0 0
    %106 = vmatprep.subr.bf16.mxu0 0
    %107 = vmatpush1.bf16.msra.mxu0 0
    %108 = vmatprep.subr.bf16.mxu0 0
    %109 = vmatpush1.bf16.msra.mxu0 0
    %110 = vmatprep.subr.bf16.mxu0 0
    %111 = vmatpush1.bf16.msra.mxu0 0
    %112 = vmatprep.subr.bf16.mxu0 0
    %113 = vmatpush1.bf16.msra.mxu0 0
    %114 = vmatprep.subr.bf16.mxu0 0
    %115 = vmatpush1.bf16.msra.mxu0 0
    %116 = vmatprep.subr.bf16.mxu0 0
    %117 = vmatpush1.bf16.msra.mxu0 0
    %118 = vmatprep.subr.bf16.mxu0 0
    %119 = vmatpush1.bf16.msra.mxu0 0
    %120 = vmatprep.mubr.bf16.mxu0 0
    %121 = vmatmul.mubr.bf16.gmra.mrb[0].mxu0 %v23
    %v122 = vpop.f32.mrb[0].mxu0
    %v123 = vadd.f32 0.0, %v122
    %v124 = vpop.f32.mrb[0].mxu0
    %v125 = vpop.f32.mrb[0].mxu0
    %v126 = vpop.f32.mrb[0].mxu0
    %127 = vdwg.mxu0
    %v128 = vadd.f32 %v22, %v123
    %vm129 = vcmask 31744
    %130 = vst.msk [vmem:[#allocation2] sm:$0xff] %vm129, %v128
    // Predicated region
    $region18: #{tpu_custom_call.1} parent=1 // pred_check
      %p131 = pneg %p16
    $region19: #{tpu_custom_call.1} parent=1 // pred_check_branch
      %133 = sbr.rel (%p131) target = $region21
    $region20: #{tpu_custom_call.1} parent=1 // pred_region
      %v134 = vld [vmem:[%s2] sm:$0x1]
      %v135 = vld [vmem:[#allocation2] sm:$0xff]
      %v136 = vlaneseq
      %v137 = vshrl.u32 %v136, 7
      %v138 = vsub.s32 0, %v137
      %v139 = vrot.slane %v134, %v138
      %v140 = vadd.f32 %v135, %v139
      %v141 = vmax.f32 %v140, 0.0
      %v142 = vld [vmem:[%s2 + $0x8] sm:$0xf]
      %v143 = vld [vmem:[%s2 + $0x10] sm:$0x1]
      %v144 = vlaneseq
      %v145 = vshrl.u32 %v144, 7
      %v146 = vsub.s32 0, %v145
      %v147 = vrot.slane %v143, %v146
      %v149 = vsel %vm129, %v141, 0
      %vm151 = vcmask 1043456
      %v153 = vsel %vm151, %v142, 0
      %155 = vmatprep.subr.mxu0 0.0
      %156 = vmatpush1.msra.mxu0 %v153
      %157 = vmatprep.subr.mxu0 0.0
      %158 = vmatpush1.msra.mxu0 0.0
      %159 = vmatprep.subr.mxu0 0.0
      %160 = vmatpush1.msra.mxu0 0.0
      %161 = vmatprep.subr.mxu0 0.0
      %162 = vmatpush1.msra.mxu0 0.0
      %163 = vmatprep.subr.mxu0 0.0
      %164 = vmatpush1.msra.mxu0 0.0
      %165 = vmatprep.subr.mxu0 0.0
      %166 = vmatpush1.msra.mxu0 0.0
      %167 = vmatprep.subr.mxu0 0.0
      %168 = vmatpush1.msra.mxu0 0.0
      %169 = vmatprep.subr.mxu0 0.0
      %170 = vmatpush1.msra.mxu0 0.0
      %171 = vmatprep.subr.mxu0 0.0
      %172 = vmatpush1.msra.mxu0 0.0
      %173 = vmatprep.subr.mxu0 0.0
      %174 = vmatpush1.msra.mxu0 0.0
      %175 = vmatprep.subr.mxu0 0.0
      %176 = vmatpush1.msra.mxu0 0.0
      %177 = vmatprep.subr.mxu0 0.0
      %178 = vmatpush1.msra.mxu0 0.0
      %179 = vmatprep.subr.mxu0 0.0
      %180 = vmatpush1.msra.mxu0 0.0
      %181 = vmatprep.subr.mxu0 0.0
      %182 = vmatpush1.msra.mxu0 0.0
      %183 = vmatprep.subr.mxu0 0.0
      %184 = vmatpush1.msra.mxu0 0.0
      %185 = vmatprep.subr.mxu0 0.0
      %186 = vmatpush1.msra.mxu0 0.0
      %187 = vmatprep.subr.mxu0 0.0
      %188 = vmatpush1.msra.mxu0 0.0
      %189 = vmatprep.subr.mxu0 0.0
      %190 = vmatpush1.msra.mxu0 0.0
      %191 = vmatprep.subr.mxu0 0.0
      %192 = vmatpush1.msra.mxu0 0.0
      %193 = vmatprep.subr.mxu0 0.0
      %194 = vmatpush1.msra.mxu0 0.0
      %195 = vmatprep.subr.mxu0 0.0
      %196 = vmatpush1.msra.mxu0 0.0
      %197 = vmatprep.subr.mxu0 0.0
      %198 = vmatpush1.msra.mxu0 0.0
      %199 = vmatprep.subr.mxu0 0.0
      %200 = vmatpush1.msra.mxu0 0.0
      %201 = vmatprep.subr.mxu0 0.0
      %202 = vmatpush1.msra.mxu0 0.0
      %203 = vmatprep.subr.mxu0 0.0
      %204 = vmatpush1.msra.mxu0 0.0
      %205 = vmatprep.subr.mxu0 0.0
      %206 = vmatpush1.msra.mxu0 0.0
      %207 = vmatprep.subr.mxu0 0.0
      %208 = vmatpush1.msra.mxu0 0.0
      %209 = vmatprep.subr.mxu0 0.0
      %210 = vmatpush1.msra.mxu0 0.0
      %211 = vmatprep.subr.mxu0 0.0
      %212 = vmatpush1.msra.mxu0 0.0
      %213 = vmatprep.subr.mxu0 0.0
      %214 = vmatpush1.msra.mxu0 0.0
      %215 = vmatprep.subr.mxu0 0.0
      %216 = vmatpush1.msra.mxu0 0.0
      %217 = vmatprep.subr.mxu0 0.0
      %218 = vmatpush1.msra.mxu0 0.0
      %219 = vmatprep.mubr.f32.mxu0 0.0
      %220 = vmatmul.mubr.f32.gmra.mrb[0].mxu0 %v149
      %v221 = vpop.f32.mrb[0].mxu0
      %v222 = vadd.f32 %v147, %v221
      %v223 = vpop.f32.mrb[0].mxu0
      %224 = vdwg.mxu0
      %225 = vst [vmem:[#allocation3] sm:$0xff] %v222
    $region21: #{tpu_custom_call.1} parent=1 // pred_fallthru
      _
    // Predicated region
    $region22: #{tpu_custom_call.1} parent=1 // pred_check
      _
    $region23: #{tpu_custom_call.1} parent=1 // pred_check_branch
      %227 = sbr.rel (0) target = $region25
    $region24: #{tpu_custom_call.1} parent=1 // pred_region
      %s229 = ssub.s32 128, 128
      %230 = vsyncadd [#allocation4], %s229
      %s232 = sshll.u32 [#allocation3], 4
      %s233 = int_to_ptr.vmem [resolvable:$true] %s232
      %235 = dma.vmem_to_hbm [thread:$0]  %s233, 128, %s3, [#allocation4]
    $region25: #{tpu_custom_call.1} parent=1 // pred_fallthru
      _
    // Predicated region
    $region26: #{tpu_custom_call.1} parent=1 // pred_check
      _
    $region27: #{tpu_custom_call.1} parent=1 // pred_check_branch
      %237 = sbr.rel (0) target = $region29
    $region28: #{tpu_custom_call.1} parent=1 // pred_region
      %238 = dma.done [#allocation4], 128
    $region29: #{tpu_custom_call.1} parent=1 // pred_fallthru
      _
    %239 = vsyncpa [#allocation4], 1

</llo_original>
